<compile_context>
chip_gen: v7x
topology: tpu7x:2x2x1
jax: 0.10.0
libtpu: 0.0.40
codegen_flags: <defaults>
</compile_context>

<pallas_src>
import jax
import jax.numpy as jnp
from jax.experimental import pallas as pl
from jax.experimental.pallas import tpu as pltpu

LANES = 128


def _device_config():
    """(num_cores, max_block_rows) per TPU generation; conservative default."""
    try:
        kind = jax.devices()[0].device_kind.lower()
    except Exception:
        kind = ""
    if "v7" in kind:
        return 2, 4096    # 2 TensorCores, 3.2 TB/s HBM -> big blocks + core split
    if "v6" in kind:
        return 1, 4096    # single TC, 32 MiB default scoped VMEM
    return 1, 2048        # v5e / unknown: 16 MiB default scoped VMEM


def _make_kernel(margin, rows, block_rows, blocks_per_core):
    # Plain Python scalars so everything folds into the jaxpr as literals.
    margin = float(margin)
    rows = int(rows)
    block_rows = int(block_rows)
    blocks_per_core = int(blocks_per_core)
    sub = block_rows // 8            # block_rows is always a multiple of 8

    def fold(x):                     # (block_rows, LANES) f32 -> (8, LANES); VPU adds
        return jnp.sum(x.reshape(sub, 8, LANES), axis=0)

    def kernel(x1_ref, x2_ref, t_ref, out_ref, acc_ref):
        c = pl.program_id(0)         # core-split axis
        j = pl.program_id(1)         # streaming reduction axis

        @pl.when(j == 0)
        def _init():
            acc_ref[...] = jnp.zeros_like(acc_ref)

        # Native-dtype loads; cast to f32 after load (convert hidden under DMA).
        x1 = x1_ref[...].astype(jnp.float32)
        x2 = x2_ref[...].astype(jnp.float32)
        t = t_ref[...].astype(jnp.float32)
        hinge = jnp.maximum(margin - t * (x1 - x2), 0.0)

        # Valid-row count for this block: <=0 only for clamped duplicate blocks,
        # in (0, block_rows) only for the final partial block.
        b = c * blocks_per_core + j
        row_limit = rows - b * block_rows

        @pl.when(row_limit >= block_rows)          # hot path: fully valid block
        def _full():
            acc_ref[...] += fold(hinge)

        @pl.when(row_limit < block_rows)           # cold path: boundary / clamped
        def _boundary():
            row = jax.lax.broadcasted_iota(jnp.int32, (block_rows, LANES), 0)
            acc_ref[...] += fold(jnp.where(row < row_limit, hinge, 0.0))

        @pl.when(j == pl.num_programs(1) - 1)
        def _finalize():
            out_ref[...] = acc_ref[...][None, :, :]

    return kernel


def margin_ranking_loss(input1, input2, target, *, margin=0.2, loss_weight=5e-05,
                        reduction='mean'):
    """Pallas TPU: loss_weight * F.margin_ranking_loss(input1, input2, target)."""
    assert reduction in ('mean', 'sum'), "only 'mean'/'sum' implemented"
    # TODO(synk): reduction='none' (elementwise, unreduced output) not implemented.
    assert input1.shape == input2.shape == target.shape

    n = int(input1.size)
    margin = float(margin)
    if n == 0:
        # torch: mean of empty is NaN, sum of empty is 0.
        return jnp.float32(float('nan')) if reduction == 'mean' else jnp.float32(0.0)

    x1 = input1.reshape(-1)
    x2 = input2.reshape(-1)
    tt = target.reshape(-1)

    rows = n // LANES                 # full 128-lane rows streamed by the kernel
    n_main = rows * LANES

    # Ragged (<128-element) tail: tiny pure-JAX expression, no full-array pad.
    tail_sum = jnp.float32(0.0)
    if n_main < n:
        d = x1[n_main:].astype(jnp.float32) - x2[n_main:].astype(jnp.float32)
        tail_sum = jnp.sum(jnp.maximum(margin - tt[n_main:].astype(jnp.float32) * d, 0.0))

    if rows == 0:
        main_sum = jnp.float32(0.0)
    else:
        num_cores, max_block_rows = _device_config()
        if num_cores > 1 and not hasattr(pltpu, "CORE_PARALLEL"):
            num_cores = 1

        # block_rows is a multiple of 8 so the in-kernel (sub,8,128) fold is always
        # tile-compatible and the (8,128) constraint holds even when the block
        # overhangs the array (overhang rows masked by row_limit).
        block_rows = min(max_block_rows, ((rows + 7) // 8) * 8)
        num_blocks = pl.cdiv(rows, block_rows)
        if num_blocks < num_cores:
            num_cores = 1
        blocks_per_core = pl.cdiv(num_blocks, num_cores)

        if num_cores == 1:
            def in_map(c, j):
                return (j, 0)
            semantics = ("arbitrary", "arbitrary")
        else:
            def in_map(c, j):
                # Clamp out-of-range blocks onto the last block; their contribution
                # is zeroed by the in-kernel row mask.
                return (jnp.minimum(c * blocks_per_core + j, num_blocks - 1), 0)
            semantics = (pltpu.CORE_PARALLEL, pltpu.ARBITRARY)

        # Lane-aligned inputs: free reshape, zero copies. Ragged inputs: one prefix
        # slice (the only remaining copy; zero-copy ragged would need 1D blocks /
        # manual DMA and is not worth the complexity here).
        if n_main != n:
            x1m, x2m, ttm = x1[:n_main], x2[:n_main], tt[:n_main]
        else:
            x1m, x2m, ttm = x1, x2, tt
        x1m = x1m.reshape(rows, LANES)
        x2m = x2m.reshape(rows, LANES)
        ttm = ttm.reshape(rows, LANES)

        in_spec = pl.BlockSpec((block_rows, LANES), in_map)
        kernel = _make_kernel(margin, rows, block_rows, blocks_per_core)

        partials = pl.pallas_call(
            kernel,
            out_shape=jax.ShapeDtypeStruct((num_cores, 8, LANES), jnp.float32),
            grid_spec=pltpu.PrefetchScalarGridSpec(
                num_scalar_prefetch=0,
                grid=(num_cores, blocks_per_core),
                in_specs=[in_spec, in_spec, in_spec],
                out_specs=pl.BlockSpec((1, 8, LANES), lambda c, j: (c, 0, 0)),
                scratch_shapes=[pltpu.VMEM((8, LANES), jnp.float32)],
            ),
            compiler_params=pltpu.CompilerParams(dimension_semantics=semantics),
        )(x1m, x2m, ttm)

        main_sum = jnp.sum(partials)

    total = main_sum + tail_sum
    scale = float(loss_weight) / float(n) if reduction == 'mean' else float(loss_weight)
    return total * scale


if __name__ == "__main__":
    key = jax.random.PRNGKey(0)

    margin = 0.2
    loss_weight = 5e-05

    def reference(i1, i2, t):
        i1 = i1.astype(jnp.float32)
        i2 = i2.astype(jnp.float32)
        t = t.astype(jnp.float32)
        return loss_weight * jnp.mean(jnp.maximum(margin - t * (i1 - i2), 0.0))

    ok = True
    cases = [
        (512, jnp.float32),    # lane-aligned, single block, no copies
        (300, jnp.float32),    # ragged tail + overhanging (row-masked) block
        (1024, jnp.bfloat16),  # native low-precision streaming path
    ]
    for n, dtype in cases:
        k1, k2, k3, key = jax.random.split(key, 4)
        i1 = jax.random.normal(k1, (n,), dtype=jnp.float32).astype(dtype)
        i2 = jax.random.normal(k2, (n,), dtype=jnp.float32).astype(dtype)
        t = jnp.where(jax.random.bernoulli(k3, 0.5, (n,)), 1.0, -1.0).astype(dtype)

        loss = margin_ranking_loss(i1, i2, t, margin=margin, loss_weight=loss_weight)
        loss = jax.block_until_ready(loss)
        ref = reference(i1, i2, t)
        if not jnp.allclose(loss, ref, rtol=1e-4, atol=1e-9):
            ok = False
            print("MISMATCH", n, str(dtype), float(loss), float(ref))

    if ok:
        print("KERNEL_OK")
</pallas_src>

<mosaic_0001>
module attributes {stable_mosaic.version = 11 : i64} {
  func.func @kernel(%arg0: i32, %arg1: i32, %arg2: memref<8x128xf32, #tpu.memory_space<vmem>>, %arg3: memref<8x128xf32, #tpu.memory_space<vmem>>, %arg4: memref<8x128xf32, #tpu.memory_space<vmem>>, %arg5: memref<1x8x128xf32, #tpu.memory_space<vmem>>, %arg6: memref<8x128xf32, #tpu.memory_space<vmem>>) attributes {dimension_semantics = [#tpu.dimension_semantics<arbitrary>, #tpu.dimension_semantics<arbitrary>], iteration_bounds = array<i64: 1, 1>, scalar_prefetch = 0 : i64, scratch_operands = 1 : i64, tpu.core_type = #tpu.core_type<tc>, window_params = [{transform_indices = @transform_0, window_bounds = array<i64: 8, 128>}, {transform_indices = @transform_1, window_bounds = array<i64: 8, 128>}, {transform_indices = @transform_2, window_bounds = array<i64: 8, 128>}, {transform_indices = @transform_3, window_bounds = array<i64: 1, 8, 128>}]} {
    %c0_i32 = arith.constant 0 : i32
    %0 = arith.cmpi eq, %arg1, %c0_i32 : i32
    %1 = arith.extui %0 : i1 to i32
    %c0_i32_0 = arith.constant 0 : i32
    %2 = arith.cmpi ne, %1, %c0_i32_0 : i32
    scf.if %2 {
      %cst_13 = arith.constant 0.000000e+00 : f32
      %25 = vector.broadcast %cst_13 : f32 to vector<8x128xf32>
      %c0_14 = arith.constant 0 : index
      %c0_15 = arith.constant 0 : index
      %26 = vector.load %arg6[%c0_14, %c0_15] : memref<8x128xf32, #tpu.memory_space<vmem>>, vector<8x128xf32>
      tpu.vector_store %arg6[%c0_14, %c0_15], %25 {strides = array<i32>} : memref<8x128xf32, #tpu.memory_space<vmem>>, vector<8x128xf32>,
    } else {
    }
    %c0 = arith.constant 0 : index
    %c0_1 = arith.constant 0 : index
    %3 = vector.load %arg2[%c0, %c0_1] : memref<8x128xf32, #tpu.memory_space<vmem>>, vector<8x128xf32>
    %c0_2 = arith.constant 0 : index
    %c0_3 = arith.constant 0 : index
    %4 = vector.load %arg3[%c0_2, %c0_3] : memref<8x128xf32, #tpu.memory_space<vmem>>, vector<8x128xf32>
    %c0_4 = arith.constant 0 : index
    %c0_5 = arith.constant 0 : index
    %5 = vector.load %arg4[%c0_4, %c0_5] : memref<8x128xf32, #tpu.memory_space<vmem>>, vector<8x128xf32>
    %6 = arith.subf %3, %4 : vector<8x128xf32>
    %7 = arith.mulf %5, %6 : vector<8x128xf32>
    %cst = arith.constant 2.000000e-01 : f32
    %8 = vector.broadcast %cst : f32 to vector<8x128xf32>
    %9 = arith.subf %8, %7 : vector<8x128xf32>
    %cst_6 = arith.constant 0.000000e+00 : f32
    %10 = vector.broadcast %cst_6 : f32 to vector<8x128xf32>
    %11 = arith.maximumf %9, %10 : vector<8x128xf32>
    %c1_i32 = arith.constant 1 : i32
    %12 = arith.muli %arg0, %c1_i32 : i32
    %13 = arith.addi %12, %arg1 : i32
    %c8_i32 = arith.constant 8 : i32
    %14 = arith.muli %13, %c8_i32 : i32
    %c4_i32 = arith.constant 4 : i32
    %15 = arith.subi %c4_i32, %14 : i32
    %c8_i32_7 = arith.constant 8 : i32
    %16 = arith.cmpi sge, %15, %c8_i32_7 : i32
    %17 = arith.extui %16 : i1 to i32
    %c0_i32_8 = arith.constant 0 : i32
    %18 = arith.cmpi ne, %17, %c0_i32_8 : i32
    scf.if %18 {
      %c0_13 = arith.constant 0 : index
      %c0_14 = arith.constant 0 : index
      %25 = vector.load %arg6[%c0_13, %c0_14] : memref<8x128xf32, #tpu.memory_space<vmem>>, vector<8x128xf32>
      %26 = vector.shape_cast %11 : vector<8x128xf32> to vector<1x8x128xf32>
      %cst_15 = arith.constant dense<0.000000e+00> : vector<8x128xf32>
      %27 = vector.multi_reduction <add>, %26, %cst_15 [0] : vector<1x8x128xf32> to vector<8x128xf32>
      %28 = arith.addf %25, %27 : vector<8x128xf32>
      %c0_16 = arith.constant 0 : index
      %c0_17 = arith.constant 0 : index
      %29 = vector.load %arg6[%c0_16, %c0_17] : memref<8x128xf32, #tpu.memory_space<vmem>>, vector<8x128xf32>
      tpu.vector_store %arg6[%c0_16, %c0_17], %28 {strides = array<i32>} : memref<8x128xf32, #tpu.memory_space<vmem>>, vector<8x128xf32>,
    } else {
    }
    %c8_i32_9 = arith.constant 8 : i32
    %19 = arith.cmpi slt, %15, %c8_i32_9 : i32
    %20 = arith.extui %19 : i1 to i32
    %c0_i32_10 = arith.constant 0 : i32
    %21 = arith.cmpi ne, %20, %c0_i32_10 : i32
    scf.if %21 {
      %25 = tpu.iota {dimensions = array<i32: 0>} : vector<8x128xi32>
      %c0_13 = arith.constant 0 : index
      %c0_14 = arith.constant 0 : index
      %26 = vector.load %arg6[%c0_13, %c0_14] : memref<8x128xf32, #tpu.memory_space<vmem>>, vector<8x128xf32>
      %27 = vector.broadcast %15 : i32 to vector<8x128xi32>
      %28 = arith.cmpi slt, %25, %27 : vector<8x128xi32>
      %cst_15 = arith.constant 0.000000e+00 : f32
      %29 = vector.broadcast %cst_15 : f32 to vector<8x128xf32>
      %30 = arith.select %28, %11, %29 : vector<8x128xi1>, vector<8x128xf32>
      %31 = vector.shape_cast %30 : vector<8x128xf32> to vector<1x8x128xf32>
      %cst_16 = arith.constant dense<0.000000e+00> : vector<8x128xf32>
      %32 = vector.multi_reduction <add>, %31, %cst_16 [0] : vector<1x8x128xf32> to vector<8x128xf32>
      %33 = arith.addf %26, %32 : vector<8x128xf32>
      %c0_17 = arith.constant 0 : index
      %c0_18 = arith.constant 0 : index
      %34 = vector.load %arg6[%c0_17, %c0_18] : memref<8x128xf32, #tpu.memory_space<vmem>>, vector<8x128xf32>
      tpu.vector_store %arg6[%c0_17, %c0_18], %33 {strides = array<i32>} : memref<8x128xf32, #tpu.memory_space<vmem>>, vector<8x128xf32>,
    } else {
    }
    %c0_i32_11 = arith.constant 0 : i32
    %22 = arith.cmpi eq, %arg1, %c0_i32_11 : i32
    %23 = arith.extui %22 : i1 to i32
    %c0_i32_12 = arith.constant 0 : i32
    %24 = arith.cmpi ne, %23, %c0_i32_12 : i32
    scf.if %24 {
      %c0_13 = arith.constant 0 : index
      %c0_14 = arith.constant 0 : index
      %25 = vector.load %arg6[%c0_13, %c0_14] : memref<8x128xf32, #tpu.memory_space<vmem>>, vector<8x128xf32>
      %26 = vector.shape_cast %25 : vector<8x128xf32> to vector<1x8x128xf32>
      %c0_15 = arith.constant 0 : index
      %c0_16 = arith.constant 0 : index
      %c0_17 = arith.constant 0 : index
      %27 = vector.load %arg5[%c0_15, %c0_16, %c0_17] : memref<1x8x128xf32, #tpu.memory_space<vmem>>, vector<1x8x128xf32>
      tpu.vector_store %arg5[%c0_15, %c0_16, %c0_17], %26 {strides = array<i32>} : memref<1x8x128xf32, #tpu.memory_space<vmem>>, vector<1x8x128xf32>,
    } else {
    }
    return
  }
  func.func @transform_0(%arg0: i32, %arg1: i32) -> (i32, i32) {
    %c0_i32 = arith.constant 0 : i32
    %c0_i32_0 = arith.constant 0 : i32
    return %arg1, %c0_i32 : i32, i32
  }
  func.func @transform_1(%arg0: i32, %arg1: i32) -> (i32, i32) {
    %c0_i32 = arith.constant 0 : i32
    %c0_i32_0 = arith.constant 0 : i32
    return %arg1, %c0_i32 : i32, i32
  }
  func.func @transform_2(%arg0: i32, %arg1: i32) -> (i32, i32) {
    %c0_i32 = arith.constant 0 : i32
    %c0_i32_0 = arith.constant 0 : i32
    return %arg1, %c0_i32 : i32, i32
  }
  func.func @transform_3(%arg0: i32, %arg1: i32) -> (i32, i32, i32) {
    %c0_i32 = arith.constant 0 : i32
    %c0_i32_0 = arith.constant 0 : i32
    %c0_i32_1 = arith.constant 0 : i32
    return %arg0, %c0_i32, %c0_i32_0 : i32, i32, i32
  }
}

</mosaic_0001>

<llo_original>
// kernel: tpu_custom_call.1
$region0: #{tpu_custom_call.1}
  #allocation0 [shape = 'u32[]', space=smem, size = 0x4, offset = 0x4, fixed_abs, tag = 'smem constant byte address 0x4 - core index']
  #allocation1 [shape = 'u32[144,128]{1,0:T(1,128)}', space=vmem, size = 0x12000, scoped, tag = 'internal scratch']
  #allocation2 [shape = 'f32[8,128]{1,0:T(8,128)}', space=vmem, size = 0x1000, scoped, tag = 'scratch operand']
  %s0 = inlined_call_operand.hbm [shape: f32[4,128], index: 0, kind: input, shape index: {}]
  %s1 = inlined_call_operand.hbm [shape: f32[4,128], index: 1, kind: input, shape index: {}]
  %s2 = inlined_call_operand.vmem [shape: f32[4,128], index: 2, kind: input, shape index: {}]
  %s3 = inlined_call_operand.hbm [shape: f32[1,8,128], index: 3, kind: output, shape index: {}]
  %s4 = sld [smem:[#allocation0]]
  $region46: #{tpu_custom_call.1} parent=0
    _
  %s6 = ssub.s32 1, %s4
  %s7 = scalar_select 0, %s6, %s4
  $region1: #{tpu_custom_call.1} parent=0
    #allocation3 [shape = 'u8[4096]{0}', space=vmem, size = 0x1000, scoped, tag = 'input window, operand 0, single buffered']
    #allocation4 [shape = 's32[1]{0}', space=sflag, size = 0x4, scoped, tag = 'scoped memory for tpu_custom_call.1']
    #allocation5 [shape = 's32[1]{0}', space=sflag, size = 0x4, scoped, tag = 'scoped memory for tpu_custom_call.1']
    #allocation6 [shape = 'u8[4096]{0}', space=vmem, size = 0x1000, scoped, tag = 'input window, operand 1, single buffered']
    #allocation7 [shape = 's32[1]{0}', space=sflag, size = 0x4, scoped, tag = 'scoped memory for tpu_custom_call.1']
    #allocation8 [shape = 'u8[4096]{0}', space=vmem, size = 0x1000, scoped, tag = 'output window, operand 0, single buffered']
    %8 = vsyncpa [#allocation4], 0
    %9 = vsyncpa [#allocation7], 0
    %10 = vsyncpa [#allocation5], 0
    // Predicated region
    $region2: #{tpu_custom_call.1} parent=1 // pred_check
      _
    $region3: #{tpu_custom_call.1} parent=1 // pred_check_branch
      %12 = sbr.rel (0) target = $region5
    $region4: #{tpu_custom_call.1} parent=1 // pred_region
      %s14 = ssub.s32 128, 64
      %15 = vsyncadd [#allocation4], %s14
      %s16 = sshll.u32 [#allocation3], 4
      %s17 = int_to_ptr.vmem [resolvable:$true] %s16
      %22 = dma.hbm_to_vmem [thread:$0]  %s0, 64, %s17, [#allocation4], 64, 64, 4
    $region5: #{tpu_custom_call.1} parent=1 // pred_fallthru
      _
    // Predicated region
    $region6: #{tpu_custom_call.1} parent=1 // pred_check
      _
    $region7: #{tpu_custom_call.1} parent=1 // pred_check_branch
      %24 = sbr.rel (0) target = $region9
    $region8: #{tpu_custom_call.1} parent=1 // pred_region
      %s26 = ssub.s32 128, 64
      %27 = vsyncadd [#allocation7], %s26
      %s28 = sshll.u32 [#allocation6], 4
      %s29 = int_to_ptr.vmem [resolvable:$true] %s28
      %34 = dma.hbm_to_vmem [thread:$0]  %s1, 64, %s29, [#allocation7], 64, 64, 4
    $region9: #{tpu_custom_call.1} parent=1 // pred_fallthru
      _
    // Predicated region
    $region10: #{tpu_custom_call.1} parent=1 // pred_check
      _
    $region11: #{tpu_custom_call.1} parent=1 // pred_check_branch
      %36 = sbr.rel (0) target = $region13
    $region12: #{tpu_custom_call.1} parent=1 // pred_region
      _
    $region13: #{tpu_custom_call.1} parent=1 // pred_fallthru
      _
    // Predicated region
    $region14: #{tpu_custom_call.1} parent=1 // pred_check
      _
    $region15: #{tpu_custom_call.1} parent=1 // pred_check_branch
      %38 = sbr.rel (0) target = $region17
    $region16: #{tpu_custom_call.1} parent=1 // pred_region
      %39 = dma.done [#allocation4], 128
    $region17: #{tpu_custom_call.1} parent=1 // pred_fallthru
      _
    // Predicated region
    $region18: #{tpu_custom_call.1} parent=1 // pred_check
      _
    $region19: #{tpu_custom_call.1} parent=1 // pred_check_branch
      %41 = sbr.rel (0) target = $region21
    $region20: #{tpu_custom_call.1} parent=1 // pred_region
      %42 = dma.done [#allocation7], 128
    $region21: #{tpu_custom_call.1} parent=1 // pred_fallthru
      _
    %p43 = scmp.eq.s32.totalorder 0, 0
    // Predicated region
    $region22: #{tpu_custom_call.1} parent=1 // pred_check
      %p44 = pneg %p43
    $region23: #{tpu_custom_call.1} parent=1 // pred_check_branch
      %46 = sbr.rel (%p44) target = $region25
    $region24: #{tpu_custom_call.1} parent=1 // pred_region
      %47 = vst [vmem:[#allocation2] sm:$0xff] 0.0
    $region25: #{tpu_custom_call.1} parent=1 // pred_fallthru
      _
    %v48 = vld [vmem:[#allocation3] sm:$0xff]
    %v49 = vld [vmem:[#allocation6] sm:$0xff]
    %v50 = vld [vmem:[%s2] sm:$0xff]
    %v51 = vsub.f32 %v48, %v49
    %v52 = vmul.f32 %v50, %v51
    %v53 = vsub.f32 0.2, %v52
    %v54 = vmax.f32 %v53, 0.0
    %s55 = sadd.s32 0, 0
    %s56 = smul.u32 %s55, 8
    %s57 = ssub.s32 4, %s56
    %p58 = scmp.ge.s32.totalorder %s57, 8
    // Predicated region
    $region26: #{tpu_custom_call.1} parent=1 // pred_check
      %p59 = pneg %p58
    $region27: #{tpu_custom_call.1} parent=1 // pred_check_branch
      %61 = sbr.rel (%p59) target = $region29
    $region28: #{tpu_custom_call.1} parent=1 // pred_region
      %v62 = vld [vmem:[#allocation2] sm:$0xff]
      %v63 = vadd.f32 %v54, 0.0
      %v64 = vadd.f32 %v62, %v63
      %65 = vst [vmem:[#allocation2] sm:$0xff] %v64
    $region29: #{tpu_custom_call.1} parent=1 // pred_fallthru
      _
    %p66 = scmp.lt.s32.totalorder %s57, 8
    // Predicated region
    $region30: #{tpu_custom_call.1} parent=1 // pred_check
      %p67 = pneg %p66
    $region31: #{tpu_custom_call.1} parent=1 // pred_check_branch
      %69 = sbr.rel (%p67) target = $region33
    $region32: #{tpu_custom_call.1} parent=1 // pred_region
      %v70 = vlaneseq
      %v71 = vshrl.u32 %v70, 7
      %v72 = vld [vmem:[#allocation2] sm:$0xff]
      %v73 = vstv %s57
      %vm74 = vcmp.lt.s32.totalorder %v71, %v73
      %v75 = vsel %vm74, %v54, 0.0
      %v76 = vadd.f32 %v75, 0.0
      %v77 = vadd.f32 %v72, %v76
      %78 = vst [vmem:[#allocation2] sm:$0xff] %v77
    $region33: #{tpu_custom_call.1} parent=1 // pred_fallthru
      _
    // Predicated region
    $region34: #{tpu_custom_call.1} parent=1 // pred_check
      %p79 = pneg %p43
    $region35: #{tpu_custom_call.1} parent=1 // pred_check_branch
      %81 = sbr.rel (%p79) target = $region37
    $region36: #{tpu_custom_call.1} parent=1 // pred_region
      %v82 = vld [vmem:[#allocation2] sm:$0xff]
      %83 = vst [vmem:[#allocation8] sm:$0xff] %v82
    $region37: #{tpu_custom_call.1} parent=1 // pred_fallthru
      _
    // Predicated region
    $region38: #{tpu_custom_call.1} parent=1 // pred_check
      _
    $region39: #{tpu_custom_call.1} parent=1 // pred_check_branch
      %85 = sbr.rel (0) target = $region41
    $region40: #{tpu_custom_call.1} parent=1 // pred_region
      %s87 = ssub.s32 128, 128
      %88 = vsyncadd [#allocation5], %s87
      %s90 = sshll.u32 [#allocation8], 4
      %s91 = int_to_ptr.vmem [resolvable:$true] %s90
      %93 = dma.vmem_to_hbm [thread:$0]  %s91, 128, %s3, [#allocation5]
    $region41: #{tpu_custom_call.1} parent=1 // pred_fallthru
      _
    // Predicated region
    $region42: #{tpu_custom_call.1} parent=1 // pred_check
      _
    $region43: #{tpu_custom_call.1} parent=1 // pred_check_branch
      %95 = sbr.rel (0) target = $region45
    $region44: #{tpu_custom_call.1} parent=1 // pred_region
      %96 = dma.done [#allocation5], 128
    $region45: #{tpu_custom_call.1} parent=1 // pred_fallthru
      _
    %97 = vsyncpa [#allocation4], 1
    %98 = vsyncpa [#allocation7], 1
    %99 = vsyncpa [#allocation5], 1

</llo_original>
